<compile_context>
chip_gen: v7x
topology: tpu7x:2x2x1
jax: 0.10.0
libtpu: 0.0.40
codegen_flags: <defaults>
</compile_context>

<pallas_src>
import functools

import jax
import jax.numpy as jnp
from jax import lax
from jax.experimental import pallas as pl
from jax.experimental.pallas import tpu as pltpu


def _fc_bn_kernel(x_ref, w_ref, gb_ref, o_ref, *acc_scratch, eps):
    # x_ref:  (M, tk)   activation tile (full batch; K slice, possibly all of K)
    # w_ref:  (tk, tn)  weight tile, already transposed to [IN, OUT]
    # gb_ref: (2, tn)   row 0 = gamma, row 1 = beta (f32)
    # o_ref:  (M, tn)   output tile; doubles as the f32 accumulator for f32 out
    # acc_scratch: optional (M, tn) f32 scratch when the output is not f32
    acc_ref = acc_scratch[0] if acc_scratch else o_ref
    k = pl.program_id(1)

    prod = jnp.dot(x_ref[...], w_ref[...], preferred_element_type=jnp.float32)

    @pl.when(k == 0)
    def _first():
        acc_ref[...] = prod

    @pl.when(k > 0)
    def _accumulate():
        acc_ref[...] += prod

    @pl.when(k == pl.num_programs(1) - 1)
    def _epilogue():
        # BatchNorm(training) as a per-column affine: y = acc*scale + shift.
        # One fused read for colsum / col-sum-of-squares, one pass for the
        # store; no (M, tn) temporaries. E[z^2]-E[z]^2 is fine in f32 here;
        # the clamp guards the tiny-negative cancellation case.
        acc = acc_ref[...]
        inv_m = 1.0 / acc.shape[0]
        mean = jnp.sum(acc, axis=0, keepdims=True) * inv_m
        ex2 = jnp.sum(acc * acc, axis=0, keepdims=True) * inv_m
        var = jnp.maximum(ex2 - mean * mean, 0.0)
        inv_std = lax.rsqrt(var + eps)
        scale = gb_ref[0:1, :] * inv_std           # (1, tn)
        shift = gb_ref[1:2, :] - scale * mean      # (1, tn)
        o_ref[...] = (acc * scale + shift).astype(o_ref.dtype)


def _round_up(x, m):
    return ((x + m - 1) // m) * m


def _pick_tile(dim, preferred):
    """Largest 128-multiple <= preferred that divides dim (dim % 128 == 0)."""
    t = max(128, min(preferred, dim))
    t -= t % 128
    while dim % t:
        t -= 128
    return t


def _vmem_capacity_bytes():
    try:
        info = pltpu.get_tpu_info()
        cap = getattr(info, "vmem_capacity_bytes", None)
        if cap:
            return int(cap)
    except Exception:
        pass
    return 64 << 20  # conservative default (v7x per-TensorCore VMEM)


def fc_bn(x, weight, bias, gamma, beta, *, eps=1e-5,
          compute_dtype=None, out_dtype=None):
    """Fused Linear + BatchNorm1d (training-mode batch statistics).

    x:      (M, IN)
    weight: (OUT, IN)   -- PyTorch nn.Linear layout
    bias:   (OUT,) or None -- accepted for API parity; mathematically a no-op
                              under BatchNorm (mean subtraction cancels it)
    gamma:  (OUT,)      -- bn.weight
    beta:   (OUT,)      -- bn.bias
    returns (M, OUT) in out_dtype (default x.dtype)
    """
    del bias  # exactly cancelled by batch-norm mean subtraction
    M, IN = x.shape
    OUT, IN2 = weight.shape
    assert IN == IN2, (IN, IN2)

    compute_dtype = jnp.dtype(compute_dtype if compute_dtype is not None else x.dtype)
    out_dtype = jnp.dtype(out_dtype if out_dtype is not None else x.dtype)

    # Pad features to 128-lane multiples -> lane-dense (unmasked) stores and
    # bounded VMEM tiles for awkward feature counts; result is sliced back.
    IN_pad = _round_up(IN, 128)
    OUT_pad = _round_up(OUT, 128)

    xp = x if IN_pad == IN else jnp.pad(x, ((0, 0), (0, IN_pad - IN)))
    xp = xp.astype(compute_dtype)
    w_t = weight.T  # (IN, OUT): contract the sublane dim, no in-kernel transpose
    if IN_pad != IN or OUT_pad != OUT:
        w_t = jnp.pad(w_t, ((0, IN_pad - IN), (0, OUT_pad - OUT)))
    w_t = w_t.astype(compute_dtype)

    gb = jnp.stack([gamma, beta]).astype(jnp.float32)  # (2, OUT)
    if OUT_pad != OUT:
        gb = jnp.pad(gb, ((0, 0), (0, OUT_pad - OUT)))

    cbytes = compute_dtype.itemsize
    obytes = out_dtype.itemsize
    need_acc = out_dtype != jnp.dtype(jnp.float32)

    cap = _vmem_capacity_bytes()
    budget = int(cap * 0.70)

    # N tile: <=256 and divides OUT_pad; halve when it would leave a single N
    # block so both v7x TensorCores get work on the "parallel" axis.
    tn = _pick_tile(OUT_pad, 256)
    if OUT_pad // tn < 2 and OUT_pad > 128:
        tn = _pick_tile(OUT_pad, max(128, tn // 2))

    def footprint(tk_):
        return (2 * M * tk_ * cbytes               # x (double-buffered)
                + 2 * tk_ * tn * cbytes            # weight tiles
                + 2 * M * tn * obytes              # output tiles
                + (M * tn * 4 if need_acc else 0)  # f32 accumulator scratch
                + 2 * 2 * tn * 4)                  # gamma/beta

    # Prefer x fully VMEM-resident (tk == IN_pad): its block index is then
    # constant across the whole grid, so x is DMA'd from HBM exactly once.
    tk = IN_pad
    if footprint(tk) > budget:
        tk = _pick_tile(IN_pad, 512)
        while tk > 128 and footprint(tk) > budget:
            tk = _pick_tile(IN_pad, tk - 128)
    # TODO(synk): if even tk=128 overflows VMEM (very large batch), the batch
    # axis would need tiling with a cross-block BN reduction (two-pass kernel).

    grid = (OUT_pad // tn, IN_pad // tk)  # N parallel, K (reduction) last

    x_reads = 1 if tk == IN_pad else grid[0]
    cost = pl.CostEstimate(
        flops=2 * M * IN_pad * OUT_pad + 6 * M * OUT_pad,
        transcendentals=OUT_pad,  # one rsqrt per output feature
        bytes_accessed=(x_reads * M * IN_pad * cbytes
                        + IN_pad * OUT_pad * cbytes
                        + 2 * OUT_pad * 4
                        + M * OUT_pad * obytes),
    )

    vmem_limit = int(min(0.9 * cap, max(footprint(tk) + (8 << 20), 32 << 20)))
    scratch = [pltpu.VMEM((M, tn), jnp.float32)] if need_acc else []

    out = pl.pallas_call(
        functools.partial(_fc_bn_kernel, eps=eps),
        out_shape=jax.ShapeDtypeStruct((M, OUT_pad), out_dtype),
        grid=grid,
        in_specs=[
            pl.BlockSpec((M, tk), lambda j, k: (0, k)),   # x (full batch, K tile)
            pl.BlockSpec((tk, tn), lambda j, k: (k, j)),  # weight.T [IN, OUT] tile
            pl.BlockSpec((2, tn), lambda j, k: (0, j)),   # [gamma; beta]
        ],
        out_specs=pl.BlockSpec((M, tn), lambda j, k: (0, j)),
        scratch_shapes=scratch,
        compiler_params=pltpu.CompilerParams(
            dimension_semantics=("parallel", "arbitrary"),
            vmem_limit_bytes=vmem_limit),
        cost_estimate=cost,
    )(xp, w_t, gb)

    return out if OUT_pad == OUT else out[:, :OUT]


if __name__ == "__main__":
    key = jax.random.PRNGKey(0)
    kx, kw, kb, kg, kbe = jax.random.split(key, 5)

    # Small but lane-aligned shapes; grid = (2, 1) with x VMEM-resident.
    batch, in_features, out_features = 8, 256, 256
    eps = 1e-5

    bound = 1.0 / (in_features ** 0.5)
    weight = jax.random.uniform(kw, (out_features, in_features),
                                minval=-bound, maxval=bound, dtype=jnp.float32)
    bias = jax.random.uniform(kb, (out_features,),
                              minval=-bound, maxval=bound, dtype=jnp.float32)
    gamma = jax.random.uniform(kg, (out_features,),
                               minval=0.5, maxval=1.5, dtype=jnp.float32)
    beta = jax.random.uniform(kbe, (out_features,),
                              minval=-0.5, maxval=0.5, dtype=jnp.float32)
    x = jax.random.normal(kx, (batch, in_features), dtype=jnp.float32)

    # Reference (plain JAX): Linear (with bias) + training-mode BatchNorm1d
    # (biased batch variance).  The bias is included here to demonstrate that
    # dropping it inside the kernel is exact (BN mean subtraction cancels it).
    z = x @ weight.T + bias
    mean = jnp.mean(z, axis=0, keepdims=True)
    var = jnp.mean((z - mean) ** 2, axis=0, keepdims=True)
    ref = gamma * (z - mean) / jnp.sqrt(var + eps) + beta

    # 1) f32 path (strict check).
    out = fc_bn(x, weight, bias, gamma, beta, eps=eps)
    jax.block_until_ready(out)
    assert out.shape == (batch, out_features)
    err = float(jnp.max(jnp.abs(out - ref)))
    assert jnp.allclose(out, ref, atol=1e-4, rtol=1e-4), f"f32 max abs err {err}"

    # 2) bf16 MXU operands, f32 accumulate / f32 output (looser tolerance vs a
    #    reference built with the same bf16-cast operands).
    zb = jnp.dot(x.astype(jnp.bfloat16), weight.T.astype(jnp.bfloat16),
                 preferred_element_type=jnp.float32)
    meanb = jnp.mean(zb, axis=0, keepdims=True)
    varb = jnp.mean((zb - meanb) ** 2, axis=0, keepdims=True)
    refb = gamma * (zb - meanb) / jnp.sqrt(varb + eps) + beta

    out_bf = fc_bn(x, weight, bias, gamma, beta, eps=eps,
                   compute_dtype=jnp.bfloat16)
    jax.block_until_ready(out_bf)
    errb = float(jnp.max(jnp.abs(out_bf - refb)))
    assert jnp.allclose(out_bf, refb, atol=3e-2, rtol=3e-2), f"bf16 max abs err {errb}"

    # 3) bf16 output path (exercises the f32 scratch accumulator).
    out_bf_o = fc_bn(x, weight, bias, gamma, beta, eps=eps,
                     compute_dtype=jnp.bfloat16, out_dtype=jnp.bfloat16)
    jax.block_until_ready(out_bf_o)
    errbo = float(jnp.max(jnp.abs(out_bf_o.astype(jnp.float32) - refb)))
    assert jnp.allclose(out_bf_o.astype(jnp.float32), refb,
                        atol=5e-2, rtol=5e-2), f"bf16-out max abs err {errbo}"

    # TODO(synk): BatchNorm1d running_mean/running_var updates (module-state
    # side effect) and eval-mode (running-stats) path are not modeled here.
    print("KERNEL_OK")
</pallas_src>

<mosaic_0001>
module attributes {stable_mosaic.version = 11 : i64} {
  func.func @_fc_bn_kernel(%arg0: i32, %arg1: i32, %arg2: memref<8x256xf32, #tpu.memory_space<vmem>>, %arg3: memref<256x128xf32, #tpu.memory_space<vmem>>, %arg4: memref<2x128xf32, #tpu.memory_space<vmem>>, %arg5: memref<8x128xf32, #tpu.memory_space<vmem>>) attributes {dimension_semantics = [#tpu.dimension_semantics<parallel>, #tpu.dimension_semantics<arbitrary>], iteration_bounds = array<i64: 2, 1>, scalar_prefetch = 0 : i64, scratch_operands = 0 : i64, tpu.core_type = #tpu.core_type<tc>, window_params = [{transform_indices = @transform_0, window_bounds = array<i64: 8, 256>}, {transform_indices = @transform_1, window_bounds = array<i64: 256, 128>}, {transform_indices = @transform_2, window_bounds = array<i64: 2, 128>}, {transform_indices = @transform_3, window_bounds = array<i64: 8, 128>}]} {
    %c0 = arith.constant 0 : index
    %c0_0 = arith.constant 0 : index
    %0 = vector.load %arg2[%c0, %c0_0] : memref<8x256xf32, #tpu.memory_space<vmem>>, vector<8x256xf32>
    %c0_1 = arith.constant 0 : index
    %c0_2 = arith.constant 0 : index
    %1 = vector.load %arg3[%c0_1, %c0_2] : memref<256x128xf32, #tpu.memory_space<vmem>>, vector<256x128xf32>
    %cst = arith.constant dense<0.000000e+00> : vector<8x128xf32>
    %2 = tpu.matmul %0, %1, %cst {dimension_numbers = #tpu.dot_dimension_numbers<[1], [0], [0], [1], [0, 0, 1, 1], [], []>} : vector<8x256xf32>, vector<256x128xf32>, vector<8x128xf32> -> vector<8x128xf32>
    %c0_i32 = arith.constant 0 : i32
    %3 = arith.cmpi eq, %arg1, %c0_i32 : i32
    %4 = arith.extui %3 : i1 to i32
    %c0_i32_3 = arith.constant 0 : i32
    %5 = arith.cmpi ne, %4, %c0_i32_3 : i32
    scf.if %5 {
      %c0_8 = arith.constant 0 : index
      %c0_9 = arith.constant 0 : index
      %12 = vector.load %arg5[%c0_8, %c0_9] : memref<8x128xf32, #tpu.memory_space<vmem>>, vector<8x128xf32>
      tpu.vector_store %arg5[%c0_8, %c0_9], %2 {strides = array<i32>} : memref<8x128xf32, #tpu.memory_space<vmem>>, vector<8x128xf32>,
    } else {
    }
    %c0_i32_4 = arith.constant 0 : i32
    %6 = arith.cmpi sgt, %arg1, %c0_i32_4 : i32
    %7 = arith.extui %6 : i1 to i32
    %c0_i32_5 = arith.constant 0 : i32
    %8 = arith.cmpi ne, %7, %c0_i32_5 : i32
    scf.if %8 {
      %c0_8 = arith.constant 0 : index
      %c0_9 = arith.constant 0 : index
      %12 = vector.load %arg5[%c0_8, %c0_9] : memref<8x128xf32, #tpu.memory_space<vmem>>, vector<8x128xf32>
      %13 = arith.addf %12, %2 : vector<8x128xf32>
      %c0_10 = arith.constant 0 : index
      %c0_11 = arith.constant 0 : index
      %14 = vector.load %arg5[%c0_10, %c0_11] : memref<8x128xf32, #tpu.memory_space<vmem>>, vector<8x128xf32>
      tpu.vector_store %arg5[%c0_10, %c0_11], %13 {strides = array<i32>} : memref<8x128xf32, #tpu.memory_space<vmem>>, vector<8x128xf32>,
    } else {
    }
    %c0_i32_6 = arith.constant 0 : i32
    %9 = arith.cmpi eq, %arg1, %c0_i32_6 : i32
    %10 = arith.extui %9 : i1 to i32
    %c0_i32_7 = arith.constant 0 : i32
    %11 = arith.cmpi ne, %10, %c0_i32_7 : i32
    scf.if %11 {
      %c0_8 = arith.constant 0 : index
      %c0_9 = arith.constant 0 : index
      %12 = vector.load %arg5[%c0_8, %c0_9] : memref<8x128xf32, #tpu.memory_space<vmem>>, vector<8x128xf32>
      %cst_10 = arith.constant dense<0.000000e+00> : vector<128xf32>
      %13 = vector.multi_reduction <add>, %12, %cst_10 [0] : vector<8x128xf32> to vector<128xf32>
      %14 = vector.shape_cast %13 : vector<128xf32> to vector<1x128xf32>
      %cst_11 = arith.constant 1.250000e-01 : f32
      %15 = vector.broadcast %cst_11 : f32 to vector<1x128xf32>
      %16 = arith.mulf %14, %15 : vector<1x128xf32>
      %17 = arith.mulf %12, %12 : vector<8x128xf32>
      %cst_12 = arith.constant dense<0.000000e+00> : vector<128xf32>
      %18 = vector.multi_reduction <add>, %17, %cst_12 [0] : vector<8x128xf32> to vector<128xf32>
      %19 = vector.shape_cast %18 : vector<128xf32> to vector<1x128xf32>
      %cst_13 = arith.constant 1.250000e-01 : f32
      %20 = vector.broadcast %cst_13 : f32 to vector<1x128xf32>
      %21 = arith.mulf %19, %20 : vector<1x128xf32>
      %22 = arith.mulf %16, %16 : vector<1x128xf32>
      %23 = arith.subf %21, %22 : vector<1x128xf32>
      %cst_14 = arith.constant 0.000000e+00 : f32
      %24 = vector.broadcast %cst_14 : f32 to vector<1x128xf32>
      %25 = arith.maximumf %23, %24 : vector<1x128xf32>
      %cst_15 = arith.constant 9.99999974E-6 : f32
      %26 = vector.broadcast %cst_15 : f32 to vector<1x128xf32>
      %27 = arith.addf %25, %26 : vector<1x128xf32>
      %28 = math.rsqrt %27 : vector<1x128xf32>
      %c0_16 = arith.constant 0 : index
      %c0_17 = arith.constant 0 : index
      %29 = vector.load %arg4[%c0_16, %c0_17] : memref<2x128xf32, #tpu.memory_space<vmem>>, vector<1x128xf32>
      %30 = arith.mulf %29, %28 : vector<1x128xf32>
      %c1 = arith.constant 1 : index
      %c0_18 = arith.constant 0 : index
      %31 = vector.load %arg4[%c1, %c0_18] : memref<2x128xf32, #tpu.memory_space<vmem>>, vector<1x128xf32>
      %32 = arith.mulf %30, %16 : vector<1x128xf32>
      %33 = arith.subf %31, %32 : vector<1x128xf32>
      %34 = vector.broadcast %30 : vector<1x128xf32> to vector<8x128xf32>
      %35 = arith.mulf %12, %34 : vector<8x128xf32>
      %36 = vector.broadcast %33 : vector<1x128xf32> to vector<8x128xf32>
      %37 = arith.addf %35, %36 : vector<8x128xf32>
      %c0_19 = arith.constant 0 : index
      %c0_20 = arith.constant 0 : index
      %38 = vector.load %arg5[%c0_19, %c0_20] : memref<8x128xf32, #tpu.memory_space<vmem>>, vector<8x128xf32>
      tpu.vector_store %arg5[%c0_19, %c0_20], %37 {strides = array<i32>} : memref<8x128xf32, #tpu.memory_space<vmem>>, vector<8x128xf32>,
    } else {
    }
    return
  }
  func.func @transform_0(%arg0: i32, %arg1: i32) -> (i32, i32) {
    %c0_i32 = arith.constant 0 : i32
    %c0_i32_0 = arith.constant 0 : i32
    return %c0_i32, %arg1 : i32, i32
  }
  func.func @transform_1(%arg0: i32, %arg1: i32) -> (i32, i32) {
    %c0_i32 = arith.constant 0 : i32
    return %arg1, %arg0 : i32, i32
  }
  func.func @transform_2(%arg0: i32, %arg1: i32) -> (i32, i32) {
    %c0_i32 = arith.constant 0 : i32
    %c0_i32_0 = arith.constant 0 : i32
    return %c0_i32, %arg0 : i32, i32
  }
  func.func @transform_3(%arg0: i32, %arg1: i32) -> (i32, i32) {
    %c0_i32 = arith.constant 0 : i32
    %c0_i32_0 = arith.constant 0 : i32
    return %c0_i32, %arg0 : i32, i32
  }
}

</mosaic_0001>

<llo_original>
// kernel: tpu_custom_call.1
$region0: #{tpu_custom_call.1}
  #allocation0 [shape = 'u32[]', space=smem, size = 0x4, offset = 0x4, fixed_abs, tag = 'smem constant byte address 0x4 - core index']
  #allocation1 [shape = 'u32[144,128]{1,0:T(1,128)}', space=vmem, size = 0x12000, scoped, tag = 'internal scratch']
  %s0 = inlined_call_operand.hbm [shape: f32[8,256], index: 0, kind: input, shape index: {}]
  %s1 = inlined_call_operand.hbm [shape: f32[256,256], index: 1, kind: input, shape index: {}]
  %s2 = inlined_call_operand.vmem [shape: f32[2,256], index: 2, kind: input, shape index: {}]
  %s3 = inlined_call_operand.hbm [shape: f32[8,256], index: 3, kind: output, shape index: {}]
  %s4 = sld [smem:[#allocation0]]
  $region65: #{tpu_custom_call.1} parent=0
    _
  %s6 = ssub.s32 1, %s4
  %s7 = scalar_select 0, %s6, %s4
  $region1: #{tpu_custom_call.1} parent=0
    #allocation2 [shape = 'u8[8192]{0}', space=vmem, size = 0x2000, scoped, tag = 'input window, operand 0, single buffered']
    #allocation3 [shape = 's32[2]{0}', space=sflag, size = 0x8, scoped, tag = 'scoped memory for tpu_custom_call.1']
    #allocation4 [shape = 's32[2]{0}', space=sflag, size = 0x8, scoped, tag = 'scoped memory for tpu_custom_call.1']
    #allocation5 [shape = 'u8[262144]{0}', space=vmem, size = 0x40000, scoped, tag = 'input window, operand 1']
    #allocation6 [shape = 's32[2]{0}', space=sflag, size = 0x8, scoped, tag = 'scoped memory for tpu_custom_call.1']
    #allocation7 [shape = 'u8[8192]{0}', space=vmem, size = 0x2000, scoped, tag = 'output window, operand 0']
    %8 = vsyncpa [#allocation3], 0
    %9 = vsyncpa [#allocation6], 0
    %s10 = scalar_lea.sflag [#allocation6], 1
    %11 = vsyncpa %s10, 0
    %12 = vsyncpa [#allocation4], 0
    %s13 = scalar_lea.sflag [#allocation4], 1
    %14 = vsyncpa %s13, 0
    loop: start=0, step=1, limit=4
    $region2: #{tpu_custom_call.1} parent=1 // loop_pre_header
      _
    $region3: #{tpu_custom_call.1} parent=1 // loop_header
      %s16 = sphi 0, %s20
      %p17 = scmp.ge.s32.totalorder %s16, 4
      %s23 = sphi 0, %s35
      %s24 = sphi 0, %s31
      %s25 = sphi 0, %s23
      %s26 = sphi 0, %s24
      %s27 = sphi 0, %s25
      %s28 = sphi 0, %s26
      %s38 = sphi 0, %s40
      %s41 = sphi 0, %s38
      %s42 = sphi 0, %s41
      %s58 = sphi 0, %s42
      %s66 = sphi 0, %s68
      %s69 = sphi 0, %s66
      %s70 = sphi 0, %s69
      %s86 = sphi 0, %s70
      %s92 = sphi 0, %s94
      %s95 = sphi 0, %s92
      %s96 = sphi 0, %s95
      %s112 = sphi 0, %s96
      %s118 = sphi 0, %s120
      %s121 = sphi 0, %s118
      %s122 = sphi 0, %s121
      %s138 = sphi 0, %s122
    $region4: #{tpu_custom_call.1} parent=1 // loop_header_branch
      %19 = sbr.rel (%p17) target = $region8
    $region5: #{tpu_custom_call.1} parent=1 // loop_body
      %s21 = ssub.s32 %s16, 1
      %s22 = ssub.s32 %s16, 2
      %s29 = sadd.s32 1, %s24
      %p30 = scmp.ge.s32.totalorder %s29, 1
      %s31 = scalar_select %p30, 0, %s29
      %s32 = sadd.s32 1, %s23
      %s33 = scalar_select %p30, %s32, %s23
      %p34 = scmp.ge.s32.totalorder %s33, 2
      %s35 = scalar_select %p34, 0, %s33
      %s36 = ssub.s32 %s24, %s31
      %p37 = scmp.eq.s32.totalorder %s36, 0
      %s39 = sadd.s32 %s38, 1
      %s40 = scalar_select %p37, %s38, %s39
      %p43 = pneg %p37
      %p44 = scmp.eq.s32.totalorder %s16, 1
      %p45 = por %p43, %p44
      %p46 = scmp.ne.s32.totalorder %s38, %s41
      %p47 = scmp.eq.s32.totalorder %s16, 0
      %p48 = por %p46, %p47
      %p49 = scmp.ne.s32.totalorder %s38, %s41
      %p50 = scmp.eq.s32.totalorder %s21, 1
      %p51 = por %p49, %p50
      %p52 = scmp.ne.s32.totalorder %s41, %s42
      %p53 = scmp.eq.s32.totalorder %s21, 0
      %p54 = por %p52, %p53
      %p55 = scmp.ne.s32.totalorder %s41, %s42
      %p56 = scmp.eq.s32.totalorder %s22, 1
      %p57 = por %p55, %p56
      %p59 = scmp.ne.s32.totalorder %s42, %s58
      %p60 = scmp.eq.s32.totalorder %s22, 0
      %p61 = por %p59, %p60
      %s62 = ssub.s32 %s24, %s31
      %s63 = ssub.s32 %s23, %s35
      %s64 = sor.u32 %s62, %s63
      %p65 = scmp.eq.s32.totalorder %s64, 0
      %s67 = sadd.s32 %s66, 1
      %s68 = scalar_select %p65, %s66, %s67
      %p71 = pneg %p65
      %p72 = scmp.eq.s32.totalorder %s16, 1
      %p73 = por %p71, %p72
      %p74 = scmp.ne.s32.totalorder %s66, %s69
      %p75 = scmp.eq.s32.totalorder %s16, 0
      %p76 = por %p74, %p75
      %p77 = scmp.ne.s32.totalorder %s66, %s69
      %p78 = scmp.eq.s32.totalorder %s21, 1
      %p79 = por %p77, %p78
      %p80 = scmp.ne.s32.totalorder %s69, %s70
      %p81 = scmp.eq.s32.totalorder %s21, 0
      %p82 = por %p80, %p81
      %p83 = scmp.ne.s32.totalorder %s69, %s70
      %p84 = scmp.eq.s32.totalorder %s22, 1
      %p85 = por %p83, %p84
      %p87 = scmp.ne.s32.totalorder %s70, %s86
      %p88 = scmp.eq.s32.totalorder %s22, 0
      %p89 = por %p87, %p88
      %s90 = ssub.s32 %s23, %s35
      %p91 = scmp.eq.s32.totalorder %s90, 0
      %s93 = sadd.s32 %s92, 1
      %s94 = scalar_select %p91, %s92, %s93
      %p97 = pneg %p91
      %p98 = scmp.eq.s32.totalorder %s16, 1
      %p99 = por %p97, %p98
      %p100 = scmp.ne.s32.totalorder %s92, %s95
      %p101 = scmp.eq.s32.totalorder %s16, 0
      %p102 = por %p100, %p101
      %p103 = scmp.ne.s32.totalorder %s92, %s95
      %p104 = scmp.eq.s32.totalorder %s21, 1
      %p105 = por %p103, %p104
      %p106 = scmp.ne.s32.totalorder %s95, %s96
      %p107 = scmp.eq.s32.totalorder %s21, 0
      %p108 = por %p106, %p107
      %p109 = scmp.ne.s32.totalorder %s95, %s96
      %p110 = scmp.eq.s32.totalorder %s22, 1
      %p111 = por %p109, %p110
      %p113 = scmp.ne.s32.totalorder %s96, %s112
      %p114 = scmp.eq.s32.totalorder %s22, 0
      %p115 = por %p113, %p114
      %s116 = ssub.s32 %s23, %s35
      %p117 = scmp.eq.s32.totalorder %s116, 0
      %s119 = sadd.s32 %s118, 1
      %s120 = scalar_select %p117, %s118, %s119
      %p123 = pneg %p117
      %p124 = scmp.eq.s32.totalorder %s16, 1
      %p125 = por %p123, %p124
      %p126 = scmp.ne.s32.totalorder %s118, %s121
      %p127 = scmp.eq.s32.totalorder %s16, 0
      %p128 = por %p126, %p127
      %p129 = scmp.ne.s32.totalorder %s118, %s121
      %p130 = scmp.eq.s32.totalorder %s21, 1
      %p131 = por %p129, %p130
      %p132 = scmp.ne.s32.totalorder %s121, %s122
      %p133 = scmp.eq.s32.totalorder %s21, 0
      %p134 = por %p132, %p133
      %p135 = scmp.ne.s32.totalorder %s121, %s122
      %p136 = scmp.eq.s32.totalorder %s22, 1
      %p137 = por %p135, %p136
      %p139 = scmp.ne.s32.totalorder %s122, %s138
      %p140 = scmp.eq.s32.totalorder %s22, 0
      %p141 = por %p139, %p140
      %p142 = scmp.le.s32.totalorder 1, %s16
      %p143 = scmp.lt.s32.totalorder %s16, 3
      %p144 = pnand %p142, %p143
      %p145 = pneg %p144
      // Predicated region
      $region9: #{tpu_custom_call.1} parent=5 // pred_check
        _
      $region10: #{tpu_custom_call.1} parent=5 // pred_check_branch
        %147 = sbr.rel (%p144) target = $region12
      $region11: #{tpu_custom_call.1} parent=5 // pred_region
        %s148 = ssub.s32 %s16, 1
        // Predicated region
        $region13: #{tpu_custom_call.1} parent=11 // pred_check
          %p149 = pneg %p54
        $region14: #{tpu_custom_call.1} parent=11 // pred_check_branch
          %151 = sbr.rel (%p149) target = $region16
        $region15: #{tpu_custom_call.1} parent=11 // pred_region
          %s152 = smul.u32 2, %s26
          %s154 = ssub.s32 256, 256
          %155 = vsyncadd [#allocation3], %s154
          %s156 = smul.addr %s152, 128
          %s157 = scalar_lea.hbm %s0, %s156
          %s159 = sshll.u32 [#allocation2], 4
          %s160 = int_to_ptr.vmem [resolvable:$true] %s159
          %162 = dma.hbm_to_vmem [thread:$0]  %s157, 256, %s160, [#allocation3]
        $region16: #{tpu_custom_call.1} parent=11 // pred_fallthru
          _
      $region12: #{tpu_custom_call.1} parent=5 // pred_fallthru
        _
      %p163 = scmp.lt.s32.totalorder %s16, 2
      // Predicated region
      $region17: #{tpu_custom_call.1} parent=5 // pred_check
        %p164 = pneg %p163
      $region18: #{tpu_custom_call.1} parent=5 // pred_check_branch
        %166 = sbr.rel (%p164) target = $region20
      $region19: #{tpu_custom_call.1} parent=5 // pred_region
        // Predicated region
        $region21: #{tpu_custom_call.1} parent=19 // pred_check
          %p167 = pneg %p76
        $region22: #{tpu_custom_call.1} parent=19 // pred_check_branch
          %169 = sbr.rel (%p167) target = $region24
        $region23: #{tpu_custom_call.1} parent=19 // pred_region
          %s170 = sand.u32 %s66, 1
          %s171 = scalar_lea.sflag [#allocation6], %s170
          %s172 = sand.u32 %s66, 1
          %s173 = smul.addr %s172, 256
          %s174 = scalar_lea.vmem [#allocation5], %s173
          %s175 = smul.u32 32, %s24
          %s177 = ssub.s32 4096, 4096
          %178 = vsyncadd %s171, %s177
          %s179 = smul.addr %s175, 2
          %s180 = sadd.s32 %s23, %s179
          %s181 = smul.addr %s180, 128
          %s182 = scalar_lea.hbm %s1, %s181
          %s183 = sshll.u32 %s174, 4
          %s184 = int_to_ptr.vmem [resolvable:$true] %s183
          %189 = dma.hbm_to_vmem [thread:$0]  %s182, 4096, %s184, %s171, 256, 128, 8
        $region24: #{tpu_custom_call.1} parent=19 // pred_fallthru
          _
        // Predicated region
        $region25: #{tpu_custom_call.1} parent=19 // pred_check
          %p190 = pneg %p102
        $region26: #{tpu_custom_call.1} parent=19 // pred_check_branch
          %192 = sbr.rel (%p190) target = $region28
        $region27: #{tpu_custom_call.1} parent=19 // pred_region
          %p193 = scmp.lt.s32.totalorder %s23, 1
          %s194 = scalar_select %p193, %s23, 1
          %s195 = smul.addr %s194, 2
          %s196 = scalar_lea.vmem %s2, %s195
        $region28: #{tpu_custom_call.1} parent=19 // pred_fallthru
          _
      $region20: #{tpu_custom_call.1} parent=5 // pred_fallthru
        _
      %p197 = scmp.le.s32.totalorder 1, %s16
      %p198 = scmp.lt.s32.totalorder %s16, 3
      %p199 = pnand %p197, %p198
      %p200 = pneg %p199
      // Predicated region
      $region29: #{tpu_custom_call.1} parent=5 // pred_check
        _
      $region30: #{tpu_custom_call.1} parent=5 // pred_check_branch
        %202 = sbr.rel (%p199) target = $region32
      $region31: #{tpu_custom_call.1} parent=5 // pred_region
        %s203 = ssub.s32 %s16, 1
        // Predicated region
        $region33: #{tpu_custom_call.1} parent=31 // pred_check
          %p204 = pneg %p54
        $region34: #{tpu_custom_call.1} parent=31 // pred_check_branch
          %206 = sbr.rel (%p204) target = $region36
        $region35: #{tpu_custom_call.1} parent=31 // pred_region
          %207 = dma.done [#allocation3], 256
        $region36: #{tpu_custom_call.1} parent=31 // pred_fallthru
          _
        %s208 = sand.u32 %s69, 1
        %s209 = scalar_lea.sflag [#allocation6], %s208
        %s210 = sand.u32 %s69, 1
        %s211 = smul.addr %s210, 256
        %s212 = scalar_lea.vmem [#allocation5], %s211
        // Predicated region
        $region37: #{tpu_custom_call.1} parent=31 // pred_check
          %p213 = pneg %p82
        $region38: #{tpu_custom_call.1} parent=31 // pred_check_branch
          %215 = sbr.rel (%p213) target = $region40
        $region39: #{tpu_custom_call.1} parent=31 // pred_region
          %216 = dma.done %s209, 4096
        $region40: #{tpu_custom_call.1} parent=31 // pred_fallthru
          _
        %p217 = pneg %p54
        %p218 = pneg %p51
        %s219 = sand.u32 %s69, 1
        %s220 = scalar_lea.sflag [#allocation6], %s219
        %s221 = sand.u32 %s69, 1
        %s222 = smul.addr %s221, 256
        %s223 = scalar_lea.vmem [#allocation5], %s222
        %p224 = pneg %p82
        %p225 = pneg %p79
        %p226 = scmp.lt.s32.totalorder %s25, 1
        %s227 = scalar_select %p226, %s25, 1
        %s228 = smul.addr %s227, 2
        %s229 = scalar_lea.vmem %s2, %s228
        %p230 = pneg %p108
        %p231 = pneg %p105
        %p232 = pneg %p134
        %p233 = pneg %p131
        %s234 = sand.u32 %s121, 1
        %s235 = scalar_lea.sflag [#allocation4], %s234
        %s236 = sand.u32 %s121, 1
        %s237 = smul.addr %s236, 8
        %s238 = scalar_lea.vmem [#allocation7], %s237
        %s239 = smul.u32 2, %s26
        %s240 = smul.u32 32, %s26
        %p241 = scmp.lt.s32.totalorder %s25, 1
        %s242 = scalar_select %p241, %s25, 1
        %s243 = smul.addr %s242, 2
        %s244 = scalar_lea.vmem %s2, %s243
        %v245 = vld [vmem:[#allocation2] sm:$0xff]
        %v246 = vld [vmem:[#allocation2 + $0x8] sm:$0xff]
        %v247 = vld [vmem:[%s212] sm:$0xff]
        %v248 = vld [vmem:[%s212 + $0x8] sm:$0xff]
        %v249 = vld [vmem:[%s212 + $0x10] sm:$0xff]
        %v250 = vld [vmem:[%s212 + $0x18] sm:$0xff]
        %v251 = vld [vmem:[%s212 + $0x20] sm:$0xff]
        %v252 = vld [vmem:[%s212 + $0x28] sm:$0xff]
        %v253 = vld [vmem:[%s212 + $0x30] sm:$0xff]
        %v254 = vld [vmem:[%s212 + $0x38] sm:$0xff]
        %v255 = vld [vmem:[%s212 + $0x40] sm:$0xff]
        %v256 = vld [vmem:[%s212 + $0x48] sm:$0xff]
        %v257 = vld [vmem:[%s212 + $0x50] sm:$0xff]
        %v258 = vld [vmem:[%s212 + $0x58] sm:$0xff]
        %v259 = vld [vmem:[%s212 + $0x60] sm:$0xff]
        %v260 = vld [vmem:[%s212 + $0x68] sm:$0xff]
        %v261 = vld [vmem:[%s212 + $0x70] sm:$0xff]
        %v262 = vld [vmem:[%s212 + $0x78] sm:$0xff]
        %v263 = vld [vmem:[%s212 + $0x80] sm:$0xff]
        %v264 = vld [vmem:[%s212 + $0x88] sm:$0xff]
        %v265 = vld [vmem:[%s212 + $0x90] sm:$0xff]
        %v266 = vld [vmem:[%s212 + $0x98] sm:$0xff]
        %v267 = vld [vmem:[%s212 + $0xa0] sm:$0xff]
        %v268 = vld [vmem:[%s212 + $0xa8] sm:$0xff]
        %v269 = vld [vmem:[%s212 + $0xb0] sm:$0xff]
        %v270 = vld [vmem:[%s212 + $0xb8] sm:$0xff]
        %v271 = vld [vmem:[%s212 + $0xc0] sm:$0xff]
        %v272 = vld [vmem:[%s212 + $0xc8] sm:$0xff]
        %v273 = vld [vmem:[%s212 + $0xd0] sm:$0xff]
        %v274 = vld [vmem:[%s212 + $0xd8] sm:$0xff]
        %v275 = vld [vmem:[%s212 + $0xe0] sm:$0xff]
        %v276 = vld [vmem:[%s212 + $0xe8] sm:$0xff]
        %v277 = vld [vmem:[%s212 + $0xf0] sm:$0xff]
        %v278 = vld [vmem:[%s212 + $0xf8] sm:$0xff]
        %279 = vmatprep.subr.mxu0 0.0
        %280 = vmatpush1.msra.mxu0 %v247
        %281 = vmatprep.subr.mxu0 0.0
        %282 = vmatpush1.msra.mxu0 %v248
        %283 = vmatprep.subr.mxu0 0.0
        %284 = vmatpush1.msra.mxu0 %v249
        %285 = vmatprep.subr.mxu0 0.0
        %286 = vmatpush1.msra.mxu0 %v250
        %287 = vmatprep.subr.mxu0 0.0
        %288 = vmatpush1.msra.mxu0 %v251
        %289 = vmatprep.subr.mxu0 0.0
        %290 = vmatpush1.msra.mxu0 %v252
        %291 = vmatprep.subr.mxu0 0.0
        %292 = vmatpush1.msra.mxu0 %v253
        %293 = vmatprep.subr.mxu0 0.0
        %294 = vmatpush1.msra.mxu0 %v254
        %295 = vmatprep.subr.mxu0 0.0
        %296 = vmatpush1.msra.mxu0 %v255
        %297 = vmatprep.subr.mxu0 0.0
        %298 = vmatpush1.msra.mxu0 %v256
        %299 = vmatprep.subr.mxu0 0.0
        %300 = vmatpush1.msra.mxu0 %v257
        %301 = vmatprep.subr.mxu0 0.0
        %302 = vmatpush1.msra.mxu0 %v258
        %303 = vmatprep.subr.mxu0 0.0
        %304 = vmatpush1.msra.mxu0 %v259
        %305 = vmatprep.subr.mxu0 0.0
        %306 = vmatpush1.msra.mxu0 %v260
        %307 = vmatprep.subr.mxu0 0.0
        %308 = vmatpush1.msra.mxu0 %v261
        %309 = vmatprep.subr.mxu0 0.0
        %310 = vmatpush1.msra.mxu0 %v262
        %311 = vmatprep.subr.mxu0 0.0
        %312 = vmatpush1.msra.mxu0 %v263
        %313 = vmatprep.subr.mxu0 0.0
        %314 = vmatpush1.msra.mxu0 %v264
        %315 = vmatprep.subr.mxu0 0.0
        %316 = vmatpush1.msra.mxu0 %v265
        %317 = vmatprep.subr.mxu0 0.0
        %318 = vmatpush1.msra.mxu0 %v266
        %319 = vmatprep.subr.mxu0 0.0
        %320 = vmatpush1.msra.mxu0 %v267
        %321 = vmatprep.subr.mxu0 0.0
        %322 = vmatpush1.msra.mxu0 %v268
        %323 = vmatprep.subr.mxu0 0.0
        %324 = vmatpush1.msra.mxu0 %v269
        %325 = vmatprep.subr.mxu0 0.0
        %326 = vmatpush1.msra.mxu0 %v270
        %327 = vmatprep.subr.mxu0 0.0
        %328 = vmatpush1.msra.mxu0 %v271
        %329 = vmatprep.subr.mxu0 0.0
        %330 = vmatpush1.msra.mxu0 %v272
        %331 = vmatprep.subr.mxu0 0.0
        %332 = vmatpush1.msra.mxu0 %v273
        %333 = vmatprep.subr.mxu0 0.0
        %334 = vmatpush1.msra.mxu0 %v274
        %335 = vmatprep.subr.mxu0 0.0
        %336 = vmatpush1.msra.mxu0 %v275
        %337 = vmatprep.subr.mxu0 0.0
        %338 = vmatpush1.msra.mxu0 %v276
        %339 = vmatprep.subr.mxu0 0.0
        %340 = vmatpush1.msra.mxu0 %v277
        %341 = vmatprep.subr.mxu0 0.0
        %342 = vmatpush1.msra.mxu0 %v278
        %343 = vmatprep.mubr.f32.mxu0 %v246
        %344 = vmatmul.mubr.f32.gmra.mrb[0].mxu0 %v245
        %v345 = vpop.f32.mrb[0].mxu0
        %v346 = vadd.f32 0.0, %v345
        %v347 = vpop.f32.mrb[0].mxu0
        %348 = vdwg.mxu0
        %p349 = scmp.eq.s32.totalorder %s26, 0
        // Predicated region
        $region41: #{tpu_custom_call.1} parent=31 // pred_check
          %p350 = pneg %p349
        $region42: #{tpu_custom_call.1} parent=31 // pred_check_branch
          %352 = sbr.rel (%p350) target = $region44
        $region43: #{tpu_custom_call.1} parent=31 // pred_region
          %353 = vst [vmem:[%s238] sm:$0xff] %v346
        $region44: #{tpu_custom_call.1} parent=31 // pred_fallthru
          _
        %p354 = scmp.gt.s32.totalorder %s26, 0
        // Predicated region
        $region45: #{tpu_custom_call.1} parent=31 // pred_check
          %p355 = pneg %p354
        $region46: #{tpu_custom_call.1} parent=31 // pred_check_branch
          %357 = sbr.rel (%p355) target = $region48
        $region47: #{tpu_custom_call.1} parent=31 // pred_region
          %v358 = vld [vmem:[%s238] sm:$0xff]
          %v359 = vadd.f32 %v358, %v346
          %360 = vst [vmem:[%s238] sm:$0xff] %v359
        $region48: #{tpu_custom_call.1} parent=31 // pred_fallthru
          _
        // Predicated region
        $region49: #{tpu_custom_call.1} parent=31 // pred_check
          %p361 = pneg %p349
        $region50: #{tpu_custom_call.1} parent=31 // pred_check_branch
          %363 = sbr.rel (%p361) target = $region52
        $region51: #{tpu_custom_call.1} parent=31 // pred_region
          %v364 = vld [vmem:[%s238] sm:$0xff]
          %v365 = vrot.slane %v364, 4
          %v366 = vadd.f32 %v364, %v365
          %v367 = vrot.slane %v366, 2
          %v368 = vadd.f32 %v366, %v367
          %v369 = vrot.slane %v368, 1
          %v370 = vadd.f32 %v368, %v369
          %v371 = vmul.f32 %v370, 0.125
          %v372 = vmul.f32 %v364, %v364
          %v373 = vrot.slane %v372, 4
          %v374 = vadd.f32 %v372, %v373
          %v375 = vrot.slane %v374, 2
          %v376 = vadd.f32 %v374, %v375
          %v377 = vrot.slane %v376, 1
          %v378 = vadd.f32 %v376, %v377
          %v379 = vmul.f32 %v378, 0.125
          %v380 = vmul.f32 %v371, %v371
          %v381 = vsub.f32 %v379, %v380
          %v382 = vmax.f32 %v381, 0.0
          %v383 = vadd.f32 %v382, 1e-05
          %v384 = vrsqrt.pop %v383
          %v385 = vld [vmem:[%s244] sm:$0x1]
          %v386 = vmul.f32 %v385, %v384
          %v387 = vld [vmem:[%s244 + $0x1] sm:$0x1]
          %v388 = vmul.f32 %v386, %v371
          %v389 = vsub.f32 %v387, %v388
          %v390 = vlaneseq
          %v391 = vshrl.u32 %v390, 7
          %v392 = vsub.s32 0, %v391
          %v393 = vrot.slane %v386, %v392
          %v394 = vmul.f32 %v364, %v393
          %v395 = vlaneseq
          %v396 = vshrl.u32 %v395, 7
          %v397 = vsub.s32 0, %v396
          %v398 = vrot.slane %v389, %v397
          %v399 = vadd.f32 %v394, %v398
          %400 = vst [vmem:[%s238] sm:$0xff] %v399
        $region52: #{tpu_custom_call.1} parent=31 // pred_fallthru
          _
        %s401 = sand.u32 %s121, 1
        %s402 = scalar_lea.sflag [#allocation4], %s401
        %s403 = sand.u32 %s121, 1
        %s404 = smul.addr %s403, 8
        %s405 = scalar_lea.vmem [#allocation7], %s404
        // Predicated region
        $region53: #{tpu_custom_call.1} parent=31 // pred_check
          %p406 = pneg %p131
        $region54: #{tpu_custom_call.1} parent=31 // pred_check_branch
          %408 = sbr.rel (%p406) target = $region56
        $region55: #{tpu_custom_call.1} parent=31 // pred_region
          %s410 = ssub.s32 128, 128
          %411 = vsyncadd %s402, %s410
          %s412 = smul.addr %s25, 128
          %s413 = scalar_lea.hbm %s3, %s412
          %s415 = sshll.u32 %s405, 4
          %s416 = int_to_ptr.vmem [resolvable:$true] %s415
          %418 = dma.vmem_to_hbm [thread:$0]  %s416, 128, %s413, %s402
        $region56: #{tpu_custom_call.1} parent=31 // pred_fallthru
          _
      $region32: #{tpu_custom_call.1} parent=5 // pred_fallthru
        _
      %p419 = scmp.le.s32.totalorder 2, %s16
      // Predicated region
      $region57: #{tpu_custom_call.1} parent=5 // pred_check
        %p420 = pneg %p419
      $region58: #{tpu_custom_call.1} parent=5 // pred_check_branch
        %422 = sbr.rel (%p420) target = $region60
      $region59: #{tpu_custom_call.1} parent=5 // pred_region
        %s423 = ssub.s32 %s16, 2
        // Predicated region
        $region61: #{tpu_custom_call.1} parent=59 // pred_check
          %p424 = pneg %p137
        $region62: #{tpu_custom_call.1} parent=59 // pred_check_branch
          %426 = sbr.rel (%p424) target = $region64
        $region63: #{tpu_custom_call.1} parent=59 // pred_region
          %s427 = sand.u32 %s122, 1
          %s428 = scalar_lea.sflag [#allocation4], %s427
          %s429 = sand.u32 %s122, 1
          %s430 = smul.addr %s429, 8
          %s431 = scalar_lea.vmem [#allocation7], %s430
          %432 = dma.done %s428, 128
        $region64: #{tpu_custom_call.1} parent=59 // pred_fallthru
          _
      $region60: #{tpu_custom_call.1} parent=5 // pred_fallthru
        _
    $region6: #{tpu_custom_call.1} parent=1 // loop_footer
      %s20 = sadd.s32 1, %s16
    $region7: #{tpu_custom_call.1} parent=1 // loop_footer_branch
      %15 = sbr.rel target = $region3
    $region8: #{tpu_custom_call.1} parent=1 // loop_exit
      _
    %433 = vsyncpa [#allocation3], 1
    %s434 = scalar_lea.sflag [#allocation3], 1
    %435 = vsyncpa %s434, 1
    %436 = vsyncpa [#allocation6], 1
    %s437 = scalar_lea.sflag [#allocation6], 1
    %438 = vsyncpa %s437, 1
    %439 = vsyncpa [#allocation4], 1
    %s440 = scalar_lea.sflag [#allocation4], 1
    %441 = vsyncpa %s440, 1

</llo_original>
